<compile_context>
chip_gen: v7x
topology: tpu7x:2x2x1
jax: 0.10.0
libtpu: 0.0.40
codegen_flags: <defaults>
</compile_context>

<pallas_src>
import functools

import numpy as np
import jax
import jax.numpy as jnp
from jax import lax
from jax.experimental import pallas as pl
from jax.experimental.pallas import tpu as pltpu


def _round_up(x, m):
    return ((x + m - 1) // m) * m


# ----------------------------------------------------------------------------
# Fused criterion kernel
# ----------------------------------------------------------------------------
def _fused_criterion_kernel(src_ref, tgt_ref, mask_ref, l2_ref, sel_ref,
                            l0_ref, l1_ref, tw_ref, out_ref, *, inv_ce, ce_slot):
    """One row-tile of the masked L1/L2 reductions + (once) the weighted CE.

    src/tgt/mask: [tile_r, k_pad]  (rows = (loss-item, trajectory), lanes = flat (T,J,C))
    l2:           [tile_r, 1]  f32 (1.0 => squared error, 0.0 => abs error)
    sel:          [tile_r, 128] f32 one-hot(slot) * 1/(den+eps) * 1/num_traj
    l0/l1/tw:     [rows_ce, 128]   lane-dense CE slabs (tw = sign(class)*weight, 0 = pad)
    out:          [8, 128] f32 per-core accumulator (row 0, lane s = loss slot s)
    """
    c = pl.program_id(0)            # TensorCore split ("parallel")
    r = pl.program_id(1)            # row-tile reduction axis ("arbitrary")

    @pl.when(r == 0)
    def _init():
        out_ref[...] = jnp.zeros_like(out_ref)

    @pl.when((r == 0) & (c == 0))
    def _cross_entropy():
        # weighted 2-class cross entropy in stable softplus form,
        # normalized by 1/P like F.cross_entropy(reduction='none').mean()
        l0 = l0_ref[...].astype(jnp.float32)
        l1 = l1_ref[...].astype(jnp.float32)
        tw = tw_ref[...]
        x = jnp.where(tw > 0.0, l0 - l1, l1 - l0)                 # other - picked
        ce = jnp.abs(tw) * (jnp.maximum(x, 0.0) + jnp.log(1.0 + jnp.exp(-jnp.abs(x))))
        ce_sum = jnp.sum(ce) * inv_ce
        lanes = lax.broadcasted_iota(jnp.int32, out_ref.shape, 1)
        out_ref[...] += jnp.where(lanes == ce_slot, ce_sum, 0.0)

    # ---- masked L1 / L2 reduction for this row tile -------------------------
    src = src_ref[...].astype(jnp.float32)
    tgt = tgt_ref[...].astype(jnp.float32)
    msk = mask_ref[...].astype(jnp.float32)
    diff = src - tgt
    err = jnp.where(l2_ref[...] > 0.5, diff * diff, jnp.abs(diff))
    num = jnp.sum(msk * err, axis=-1, keepdims=True)              # [tile_r, 1]

    # per-loss segment sum on the (otherwise idle) MXU; sel already folds the exact
    # masked-mean denominator and 1/num_traj, so this is the final contribution.
    sel_w = sel_ref[...] * num                                    # [tile_r, 128]
    tile_r = sel_w.shape[0]
    ones_lhs = jnp.ones((8, tile_r), jnp.float32)
    out_ref[...] += jnp.dot(ones_lhs, sel_w, preferred_element_type=jnp.float32)


# ----------------------------------------------------------------------------
# Item building (one entry per loss-family term)
# ----------------------------------------------------------------------------
def _build_items(losses, src_kpts2d, src_depth, tgt_kpts2d, tgt_depth,
                 max_depth, cont_weights, eps):
    """Returns (name, src [M,K], tgt [M,K], mask [M,K], is_l2, den_scale, eps_row)."""
    M, T, J, _ = src_kpts2d.shape
    flat = lambda x: x.reshape(M, -1)
    items = []

    if 'root' in losses:
        vis = tgt_kpts2d[:, :, 0:1, 2:3]
        items.append(('loss_root',
                      flat(src_kpts2d[:, :, 0:1, 0:2]),
                      flat(tgt_kpts2d[:, :, 0:1, 0:2]),
                      flat(jnp.broadcast_to(vis, (M, T, 1, 2))),
                      False, 0.5, eps))
        items.append(('loss_root_depth',
                      flat(src_depth[:, :, 0:1, 0:1]),
                      flat(tgt_depth[:, :, 0:1, 0:1]),
                      flat(tgt_depth[:, :, 0:1, 1:2]),
                      False, 1.0, eps))
        items.append(('loss_root_vis',
                      flat(src_kpts2d[:, :, 0:1, 2:3]),
                      flat(tgt_kpts2d[:, :, 0:1, 2:3]),
                      jnp.ones((M, T), jnp.float32),
                      True, 1.0, 0.0))                               # exact mean
    if 'joint' in losses:
        src_joint = src_kpts2d[:, :, 1:, 0:2] + src_kpts2d[:, :, 0:1, 0:2]
        jvis = tgt_kpts2d[:, :, 1:, 2:3]
        items.append(('loss_joint',
                      flat(src_joint),
                      flat(tgt_kpts2d[:, :, 1:, 0:2]),
                      flat(jnp.broadcast_to(jvis, (M, T, J - 1, 2))),
                      False, 0.5, eps))
        src_joint_depth = src_depth[:, :, 0:1, :] + src_depth[:, :, 1:, :] / max_depth
        items.append(('loss_joint_depth',
                      flat(src_joint_depth),
                      flat(tgt_depth[:, :, 1:, 0:1]),
                      flat(tgt_depth[:, :, 1:, 1:2]),
                      False, 1.0, eps))
        items.append(('loss_joint_vis',
                      flat(src_kpts2d[:, :, 1:, 2:3]),
                      flat(jvis),
                      jnp.ones((M, T * (J - 1)), jnp.float32),
                      True, 1.0, 0.0))
    if 'joint_disp' in losses:
        jvis = tgt_kpts2d[:, :, 1:, 2:3] * tgt_kpts2d[:, :, 0:1, 2:3]
        items.append(('loss_joint_disp',
                      flat(src_kpts2d[:, :, 1:, 0:2]),
                      flat(tgt_kpts2d[:, :, 1:, 0:2] - tgt_kpts2d[:, :, 0:1, 0:2]),
                      flat(jnp.broadcast_to(jvis, (M, T, J - 1, 2))),
                      False, 0.5, eps))
        dexist = tgt_depth[:, :, 1:, 1:2] * tgt_depth[:, :, 0:1, 1:2]
        items.append(('loss_joint_depth_disp',
                      flat(src_depth[:, :, 1:, 0:1]),
                      flat(tgt_depth[:, :, 1:, 0:1] - tgt_depth[:, :, 0:1, 0:1]),
                      flat(dexist),
                      False, 1.0, eps))
    if 'joint_cont' in losses:
        wsum = float(sum(cont_weights))                              # static, no device sync
        depth_mod = jnp.concatenate(
            [src_depth[:, :, 0:1, :],
             src_depth[:, :, 0:1, :] + src_depth[:, :, 1:, :] / max_depth], axis=2)
        kepts = jnp.concatenate([src_kpts2d[..., 0:2], depth_mod], axis=-1)
        # TODO(synk): PyTorch detaches the root term in this subtraction (gradient-only diff).
        kepts = jnp.concatenate(
            [kepts[:, :, 0:1], kepts[:, :, 1:] - kepts[:, :, 0:1]], axis=2)
        cont_vis = tgt_kpts2d[:, 1:, :, 2:3] * tgt_kpts2d[:, :-1, :, 2:3]
        cw = jnp.asarray(cont_weights, jnp.float32)
        items.append(('loss_cont',
                      flat(kepts[:, 1:]),
                      flat(kepts[:, :-1]),
                      flat(cont_vis * cw),         # channel weights folded into the mask
                      True, 1.0 / wsum, eps))
    return items


# ----------------------------------------------------------------------------
# Slab packing (runs inside the same jit as the kernel)
# ----------------------------------------------------------------------------
def _pack_slabs(items, slab_dtype, inv_num_traj):
    if not items:
        tile_r, k_pad = 128, 128
        zeros = jnp.zeros((tile_r, k_pad), slab_dtype)
        return (zeros, zeros, zeros,
                jnp.zeros((tile_r, 1), jnp.float32),
                jnp.zeros((tile_r, 128), jnp.float32),
                tile_r, 1, 1, k_pad)

    k_max = max(it[1].shape[1] for it in items)
    k_pad = max(128, _round_up(k_max, 128))
    srcs, tgts, msks, l2s, sels = [], [], [], [], []
    for slot, (_, s, g, m, is_l2, den_scale, eps_row) in enumerate(items):
        mrows, k = s.shape
        padw = ((0, 0), (0, k_pad - k))
        srcs.append(jnp.pad(s.astype(slab_dtype), padw))
        tgts.append(jnp.pad(g.astype(slab_dtype), padw))
        msks.append(jnp.pad(m.astype(slab_dtype), padw))
        l2s.append(np.full((mrows, 1), 1.0 if is_l2 else 0.0, np.float32))
        # exact masked-mean denominator (no approx reciprocal), folded with 1/num_traj
        # into the one-hot segment-sum matrix consumed by the in-kernel MXU matmul.
        den = m.astype(jnp.float32).sum(axis=1) * den_scale + eps_row
        scale = inv_num_traj / den
        onehot = np.zeros((1, 128), np.float32)
        onehot[0, slot] = 1.0
        sels.append(scale[:, None] * jnp.asarray(onehot))

    src_slab = jnp.concatenate(srcs, axis=0)
    tgt_slab = jnp.concatenate(tgts, axis=0)
    mask_slab = jnp.concatenate(msks, axis=0)
    sel_slab = jnp.concatenate(sels, axis=0)
    l2_np = np.concatenate(l2s, axis=0)
    R = src_slab.shape[0]

    # Tile the row axis: keep double-buffered slabs well under v7x's 64 MiB VMEM.
    itemsz = int(jnp.dtype(slab_dtype).itemsize)
    budget = 24 * 2 ** 20
    per_row = 2 * (3 * k_pad * itemsz + 129 * 4)
    tile_cap = max(128, (budget // per_row) // 128 * 128)
    tile_r = int(min(512, tile_cap, _round_up(R, 128)))
    n_tiles = -(-R // tile_r)
    num_cores = 2 if n_tiles >= 2 else 1          # v7x: split independent rows across 2 TCs
    n_tiles = _round_up(n_tiles, num_cores)
    r_pad = n_tiles * tile_r

    rpad = ((0, r_pad - R), (0, 0))
    src_slab = jnp.pad(src_slab, rpad)
    tgt_slab = jnp.pad(tgt_slab, rpad)
    mask_slab = jnp.pad(mask_slab, rpad)
    sel_slab = jnp.pad(sel_slab, rpad)
    l2_col = jnp.asarray(np.pad(l2_np, rpad))
    return (src_slab, tgt_slab, mask_slab, l2_col, sel_slab,
            tile_r, num_cores, n_tiles // num_cores, k_pad)


# ----------------------------------------------------------------------------
# Fused device-side criterion (packing + single pallas_call, one XLA program)
# ----------------------------------------------------------------------------
@functools.partial(jax.jit, static_argnames=('losses', 'eos_coef', 'eps',
                                             'cont_weights', 'num_traj', 'max_depth'))
def _criterion_device(src_kpts2d, src_depth, tgt_kpts2d, tgt_depth, logits,
                      b_idx, s_idx, *, losses, eos_coef, eps, cont_weights,
                      num_traj, max_depth):
    slab_dtype = jnp.result_type(src_kpts2d.dtype, tgt_kpts2d.dtype)
    items = _build_items(losses, src_kpts2d, src_depth, tgt_kpts2d, tgt_depth,
                         max_depth, cont_weights, eps)
    names = [it[0] for it in items]
    (src_slab, tgt_slab, mask_slab, l2_col, sel_slab,
     tile_r, num_cores, tiles_per_core, k_pad) = _pack_slabs(items, slab_dtype,
                                                             1.0 / num_traj)

    # ---- lane-dense is_human cross-entropy slabs -----------------------------
    B, Q, T = logits.shape[:3]
    P = B * Q * T
    if 'is_human' in losses:
        tgt_vis = (tgt_kpts2d[:, :, :, 2].sum(axis=2) > 0).astype(jnp.int32)   # [M, T]
        target_classes = jnp.zeros((B, Q, T), jnp.int32).at[b_idx, s_idx].set(tgt_vis)
        cls = target_classes.reshape(P).astype(jnp.float32)
        w = jnp.where(cls > 0.5, 1.0, eos_coef)
        tw = w * (2.0 * cls - 1.0)                 # sign = class, |tw| = CE weight, 0 = pad
        lg = logits.reshape(P, 2).astype(jnp.float32)
        rows_ce = max(8, _round_up(-(-P // 128), 8))
        p_pad = rows_ce * 128

        def lane_slab(v):
            return jnp.pad(v, (0, p_pad - P)).reshape(rows_ce, 128)

        l0_slab, l1_slab, tw_slab = lane_slab(lg[:, 0]), lane_slab(lg[:, 1]), lane_slab(tw)
        inv_ce = 1.0 / float(P)                    # F.cross_entropy(reduction='none').mean()
    else:
        rows_ce = 8
        l0_slab = l1_slab = tw_slab = jnp.zeros((rows_ce, 128), jnp.float32)
        inv_ce = 1.0
    ce_slot = len(items)

    # ---- single fused pallas_call --------------------------------------------
    itemsz = int(jnp.dtype(slab_dtype).itemsize)
    vmem_need = (2 * (3 * tile_r * k_pad * itemsz + tile_r * 129 * 4)
                 + 2 * 3 * rows_ce * 128 * 4 + 4 * 8 * 128 * 4)
    vmem_limit = int(min(64 * 2 ** 20, max(2 * vmem_need, 16 * 2 ** 20)))

    row_map = lambda c, r: (c * tiles_per_core + r, 0)
    const_map = lambda c, r: (0, 0)
    kernel = functools.partial(_fused_criterion_kernel, inv_ce=inv_ce, ce_slot=ce_slot)

    out = pl.pallas_call(
        kernel,
        out_shape=jax.ShapeDtypeStruct((num_cores * 8, 128), jnp.float32),
        grid=(num_cores, tiles_per_core),
        in_specs=[
            pl.BlockSpec((tile_r, k_pad), row_map),        # src
            pl.BlockSpec((tile_r, k_pad), row_map),        # tgt
            pl.BlockSpec((tile_r, k_pad), row_map),        # mask
            pl.BlockSpec((tile_r, 1), row_map),            # l2 flag
            pl.BlockSpec((tile_r, 128), row_map),          # segment-sum matrix
            pl.BlockSpec((rows_ce, 128), const_map),       # CE l0 (fetched once)
            pl.BlockSpec((rows_ce, 128), const_map),       # CE l1
            pl.BlockSpec((rows_ce, 128), const_map),       # CE tw
        ],
        out_specs=pl.BlockSpec((8, 128), lambda c, r: (c, 0)),
        compiler_params=pltpu.CompilerParams(
            dimension_semantics=("parallel", "arbitrary"),
            vmem_limit_bytes=vmem_limit),
    )(src_slab, tgt_slab, mask_slab, l2_col, sel_slab, l0_slab, l1_slab, tw_slab)

    row = out.reshape(num_cores, 8, 128)[:, 0, :].sum(axis=0)     # combine per-core partials
    out_losses = {name: row[slot] for slot, name in enumerate(names)}
    if 'is_human' in losses:
        out_losses['loss_is_human'] = row[ce_slot]
    return out_losses


# ----------------------------------------------------------------------------
# SetCriterion (JAX / Pallas)
# ----------------------------------------------------------------------------
class SetCriterionPallas:
    def __init__(self, matcher, losses, eos_coef, weight_dict, cont_weights):
        self.matcher = matcher
        self.losses = tuple(losses)
        self.eos_coef = float(eos_coef)
        self.weight_dict = weight_dict
        self.empty_weight = jnp.array([eos_coef, 1.0], jnp.float32)
        # hoisted once: avoids a device->host sync of cont_weights every forward call
        self.cont_weights = tuple(float(v) for v in np.asarray(cont_weights))
        self.eps = 1e-5

    @staticmethod
    def _get_src_permutation_idx(indices):
        batch_idx = jnp.concatenate(
            [jnp.full_like(src, i) for i, (src, _) in enumerate(indices)])
        src_idx = jnp.concatenate([src for src, _ in indices])
        return batch_idx, src_idx

    def forward(self, outputs, targets):
        indices = self.matcher(outputs, targets)
        num_traj = float(max(sum(int(t['traj_ids'].shape[0]) for t in targets), 1))
        # TODO(synk): distributed all_reduce of num_traj omitted (single host).

        # gather matched trajectories ONCE (shared by every loss)
        b_idx, s_idx = self._get_src_permutation_idx(indices)
        src_kpts2d = outputs['pred_kpts2d'][b_idx, s_idx]        # [M, T, J, 3]
        src_depth = outputs['pred_depth'][b_idx, s_idx]          # [M, T, J, 1]
        tgt_kpts2d = jnp.concatenate(
            [t['kpts2d'][indices[i][1]] for i, t in enumerate(targets)], axis=0)
        tgt_depth = jnp.concatenate(
            [t['depth'][indices[i][1]] for i, t in enumerate(targets)], axis=0)
        max_depth = float(targets[0]['max_depth'])

        losses = _criterion_device(
            src_kpts2d, src_depth, tgt_kpts2d, tgt_depth, outputs['pred_logits'],
            b_idx, s_idx,
            losses=self.losses, eos_coef=self.eos_coef, eps=self.eps,
            cont_weights=self.cont_weights, num_traj=num_traj, max_depth=max_depth)
        # TODO(synk): 'heatmap' loss (per-keypoint scatter + gaussian_blur target generation)
        # and the 'aux_outputs' repetition are omitted.
        return losses, indices


# ----------------------------------------------------------------------------
# Synthetic matcher: identity assignment (Hungarian matcher lives outside this module).
# ----------------------------------------------------------------------------
def identity_matcher(outputs, targets):
    return [(jnp.arange(t['kpts2d'].shape[0], dtype=jnp.int32),
             jnp.arange(t['kpts2d'].shape[0], dtype=jnp.int32)) for t in targets]


# ----------------------------------------------------------------------------
# main
# ----------------------------------------------------------------------------
if __name__ == "__main__":
    key = jax.random.PRNGKey(0)
    B, Q, T, J = 2, 8, 4, 5          # batch, queries, frames, joints (root + 4)
    n_per_batch = [2, 3]             # ground-truth trajectories per batch element

    ks = jax.random.split(key, 8)
    outputs = {
        'pred_logits': jax.random.normal(ks[0], (B, Q, T, 2), jnp.float32),
        'pred_kpts2d': jax.random.uniform(ks[1], (B, Q, T, J, 3), jnp.float32),
        'pred_depth': jax.random.uniform(ks[2], (B, Q, T, J, 1), jnp.float32) * 5.0,
    }

    targets = []
    for i, n in enumerate(n_per_batch):
        kk = jax.random.split(ks[3 + i], 4)
        xy = jax.random.uniform(kk[0], (n, T, J, 2), jnp.float32)
        vis = (jax.random.uniform(kk[1], (n, T, J, 1)) > 0.3).astype(jnp.float32)
        kpts2d = jnp.concatenate([xy, vis], axis=-1)
        d = jax.random.uniform(kk[2], (n, T, J, 1), jnp.float32) * 10.0
        d_exist = (jax.random.uniform(kk[3], (n, T, J, 1)) > 0.2).astype(jnp.float32)
        depth = jnp.concatenate([d, d_exist], axis=-1)
        targets.append({'kpts2d': kpts2d,
                        'depth': depth,
                        'max_depth': 10.0,
                        'traj_ids': jnp.arange(n, dtype=jnp.int32)})

    losses_list = ['is_human', 'root', 'joint', 'joint_disp', 'joint_cont']
    weight_dict = {'loss_is_human': 1.0, 'loss_root': 5.0, 'loss_root_depth': 5.0,
                   'loss_root_vis': 1.0, 'loss_joint': 5.0, 'loss_joint_depth': 5.0,
                   'loss_joint_vis': 1.0, 'loss_joint_disp': 5.0,
                   'loss_joint_depth_disp': 5.0, 'loss_cont': 1.0}
    cont_weights = jnp.array([1.0, 1.0, 0.1], jnp.float32)

    criterion = SetCriterionPallas(identity_matcher, losses_list, eos_coef=0.1,
                                   weight_dict=weight_dict, cont_weights=cont_weights)
    losses, indices = criterion.forward(outputs, targets)

    for v in jax.tree_util.tree_leaves(losses):
        jax.block_until_ready(v)
    print("KERNEL_OK")
</pallas_src>

<mosaic_0001>
module attributes {stable_mosaic.version = 11 : i64} {
  func.func @_fused_criterion_kernel(%arg0: i32, %arg1: i32, %arg2: memref<128x128xf32, #tpu.memory_space<vmem>>, %arg3: memref<128x128xf32, #tpu.memory_space<vmem>>, %arg4: memref<128x128xf32, #tpu.memory_space<vmem>>, %arg5: memref<128x1xf32, #tpu.memory_space<vmem>>, %arg6: memref<128x128xf32, #tpu.memory_space<vmem>>, %arg7: memref<8x128xf32, #tpu.memory_space<vmem>>, %arg8: memref<8x128xf32, #tpu.memory_space<vmem>>, %arg9: memref<8x128xf32, #tpu.memory_space<vmem>>, %arg10: memref<8x128xf32, #tpu.memory_space<vmem>>) attributes {dimension_semantics = [#tpu.dimension_semantics<parallel>, #tpu.dimension_semantics<arbitrary>], iteration_bounds = array<i64: 1, 1>, scalar_prefetch = 0 : i64, scratch_operands = 0 : i64, tpu.core_type = #tpu.core_type<tc>, window_params = [{transform_indices = @transform_0, window_bounds = array<i64: 128, 128>}, {transform_indices = @transform_1, window_bounds = array<i64: 128, 128>}, {transform_indices = @transform_2, window_bounds = array<i64: 128, 128>}, {transform_indices = @transform_3, window_bounds = array<i64: 128, 1>}, {transform_indices = @transform_4, window_bounds = array<i64: 128, 128>}, {pipeline_mode = #tpu.pipeline_mode<synchronous>, transform_indices = @transform_5, window_bounds = array<i64: 8, 128>}, {pipeline_mode = #tpu.pipeline_mode<synchronous>, transform_indices = @transform_6, window_bounds = array<i64: 8, 128>}, {pipeline_mode = #tpu.pipeline_mode<synchronous>, transform_indices = @transform_7, window_bounds = array<i64: 8, 128>}, {transform_indices = @transform_8, window_bounds = array<i64: 8, 128>}]} {
    %c0_i32 = arith.constant 0 : i32
    %0 = arith.cmpi eq, %arg1, %c0_i32 : i32
    %1 = arith.extui %0 : i1 to i32
    %c0_i32_0 = arith.constant 0 : i32
    %2 = arith.cmpi ne, %1, %c0_i32_0 : i32
    scf.if %2 {
      %cst_20 = arith.constant 0.000000e+00 : f32
      %31 = vector.broadcast %cst_20 : f32 to vector<8x128xf32>
      %c0_21 = arith.constant 0 : index
      %c0_22 = arith.constant 0 : index
      %32 = vector.load %arg10[%c0_21, %c0_22] : memref<8x128xf32, #tpu.memory_space<vmem>>, vector<8x128xf32>
      tpu.vector_store %arg10[%c0_21, %c0_22], %31 {strides = array<i32>} : memref<8x128xf32, #tpu.memory_space<vmem>>, vector<8x128xf32>,
    } else {
    }
    %c0_i32_1 = arith.constant 0 : i32
    %3 = arith.cmpi eq, %arg1, %c0_i32_1 : i32
    %c0_i32_2 = arith.constant 0 : i32
    %4 = arith.cmpi eq, %arg0, %c0_i32_2 : i32
    %5 = arith.andi %3, %4 : i1
    %6 = arith.extui %5 : i1 to i32
    %c0_i32_3 = arith.constant 0 : i32
    %7 = arith.cmpi ne, %6, %c0_i32_3 : i32
    scf.if %7 {
      %c0_20 = arith.constant 0 : index
      %c0_21 = arith.constant 0 : index
      %31 = vector.load %arg7[%c0_20, %c0_21] : memref<8x128xf32, #tpu.memory_space<vmem>>, vector<8x128xf32>
      %c0_22 = arith.constant 0 : index
      %c0_23 = arith.constant 0 : index
      %32 = vector.load %arg8[%c0_22, %c0_23] : memref<8x128xf32, #tpu.memory_space<vmem>>, vector<8x128xf32>
      %c0_24 = arith.constant 0 : index
      %c0_25 = arith.constant 0 : index
      %33 = vector.load %arg9[%c0_24, %c0_25] : memref<8x128xf32, #tpu.memory_space<vmem>>, vector<8x128xf32>
      %cst_26 = arith.constant 0.000000e+00 : f32
      %34 = vector.broadcast %cst_26 : f32 to vector<8x128xf32>
      %35 = arith.cmpf ogt, %33, %34 : vector<8x128xf32>
      %36 = arith.subf %31, %32 : vector<8x128xf32>
      %37 = arith.subf %32, %31 : vector<8x128xf32>
      %38 = arith.select %35, %36, %37 : vector<8x128xi1>, vector<8x128xf32>
      %39 = math.absf %33 : vector<8x128xf32>
      %cst_27 = arith.constant 0.000000e+00 : f32
      %40 = vector.broadcast %cst_27 : f32 to vector<8x128xf32>
      %41 = arith.maximumf %38, %40 : vector<8x128xf32>
      %42 = math.absf %38 : vector<8x128xf32>
      %cst_28 = arith.constant 0.000000e+00 : f32
      %43 = vector.broadcast %cst_28 : f32 to vector<8x128xf32>
      %44 = arith.subf %43, %42 : vector<8x128xf32>
      %45 = math.exp %44 : vector<8x128xf32>
      %cst_29 = arith.constant 1.000000e+00 : f32
      %46 = vector.broadcast %cst_29 : f32 to vector<8x128xf32>
      %47 = arith.addf %46, %45 : vector<8x128xf32>
      %48 = math.log %47 : vector<8x128xf32>
      %49 = arith.addf %41, %48 : vector<8x128xf32>
      %50 = arith.mulf %39, %49 : vector<8x128xf32>
      %51 = vector.shape_cast %50 : vector<8x128xf32> to vector<1x8x128xf32>
      %cst_30 = arith.constant dense<0.000000e+00> : vector<1xf32>
      %52 = vector.multi_reduction <add>, %51, %cst_30 [1, 2] : vector<1x8x128xf32> to vector<1xf32>
      %53 = vector.shape_cast %52 : vector<1xf32> to vector<1x1x1xf32>
      %54 = vector.extract %53[0, 0, 0] : f32 from vector<1x1x1xf32>
      %cst_31 = arith.constant 1.562500e-02 : f32
      %55 = arith.mulf %54, %cst_31 : f32
      %56 = tpu.iota {dimensions = array<i32: 1>} : vector<8x128xi32>
      %c0_32 = arith.constant 0 : index
      %c0_33 = arith.constant 0 : index
      %57 = vector.load %arg10[%c0_32, %c0_33] : memref<8x128xf32, #tpu.memory_space<vmem>>, vector<8x128xf32>
      %c9_i32 = arith.constant 9 : i32
      %58 = vector.broadcast %c9_i32 : i32 to vector<8x128xi32>
      %59 = arith.cmpi eq, %56, %58 : vector<8x128xi32>
      %cst_34 = arith.constant 0.000000e+00 : f32
      %60 = vector.broadcast %55 : f32 to vector<8x128xf32>
      %61 = vector.broadcast %cst_34 : f32 to vector<8x128xf32>
      %62 = arith.select %59, %60, %61 : vector<8x128xi1>, vector<8x128xf32>
      %63 = arith.addf %57, %62 : vector<8x128xf32>
      %c0_35 = arith.constant 0 : index
      %c0_36 = arith.constant 0 : index
      %64 = vector.load %arg10[%c0_35, %c0_36] : memref<8x128xf32, #tpu.memory_space<vmem>>, vector<8x128xf32>
      tpu.vector_store %arg10[%c0_35, %c0_36], %63 {strides = array<i32>} : memref<8x128xf32, #tpu.memory_space<vmem>>, vector<8x128xf32>,
    } else {
    }
    %c0 = arith.constant 0 : index
    %c0_4 = arith.constant 0 : index
    %8 = vector.load %arg2[%c0, %c0_4] : memref<128x128xf32, #tpu.memory_space<vmem>>, vector<128x128xf32>
    %c0_5 = arith.constant 0 : index
    %c0_6 = arith.constant 0 : index
    %9 = vector.load %arg3[%c0_5, %c0_6] : memref<128x128xf32, #tpu.memory_space<vmem>>, vector<128x128xf32>
    %c0_7 = arith.constant 0 : index
    %c0_8 = arith.constant 0 : index
    %10 = vector.load %arg4[%c0_7, %c0_8] : memref<128x128xf32, #tpu.memory_space<vmem>>, vector<128x128xf32>
    %11 = arith.subf %8, %9 : vector<128x128xf32>
    %c0_9 = arith.constant 0 : index
    %c0_10 = arith.constant 0 : index
    %12 = vector.load %arg5[%c0_9, %c0_10] : memref<128x1xf32, #tpu.memory_space<vmem>>, vector<128x1xf32>
    %cst = arith.constant 5.000000e-01 : f32
    %13 = vector.broadcast %cst : f32 to vector<128x1xf32>
    %14 = arith.cmpf ogt, %12, %13 : vector<128x1xf32>
    %15 = arith.mulf %11, %11 : vector<128x128xf32>
    %16 = math.absf %11 : vector<128x128xf32>
    %17 = vector.shape_cast %14 : vector<128x1xi1> to vector<128x1xi1>
    %18 = vector.broadcast %17 : vector<128x1xi1> to vector<128x128xi1>
    %19 = arith.select %18, %15, %16 : vector<128x128xi1>, vector<128x128xf32>
    %20 = arith.mulf %10, %19 : vector<128x128xf32>
    %cst_11 = arith.constant dense<0.000000e+00> : vector<128xf32>
    %21 = vector.multi_reduction <add>, %20, %cst_11 [1] : vector<128x128xf32> to vector<128xf32>
    %22 = vector.shape_cast %21 : vector<128xf32> to vector<128x1xf32>
    %c0_12 = arith.constant 0 : index
    %c0_13 = arith.constant 0 : index
    %23 = vector.load %arg6[%c0_12, %c0_13] : memref<128x128xf32, #tpu.memory_space<vmem>>, vector<128x128xf32>
    %24 = vector.broadcast %22 : vector<128x1xf32> to vector<128x128xf32>
    %25 = arith.mulf %23, %24 : vector<128x128xf32>
    %cst_14 = arith.constant 1.000000e+00 : f32
    %26 = vector.broadcast %cst_14 : f32 to vector<8x128xf32>
    %c0_15 = arith.constant 0 : index
    %c0_16 = arith.constant 0 : index
    %27 = vector.load %arg10[%c0_15, %c0_16] : memref<8x128xf32, #tpu.memory_space<vmem>>, vector<8x128xf32>
    %cst_17 = arith.constant dense<0.000000e+00> : vector<8x128xf32>
    %28 = tpu.matmul %26, %25, %cst_17 {dimension_numbers = #tpu.dot_dimension_numbers<[1], [0], [0], [1], [0, 0, 1, 1], [], []>} : vector<8x128xf32>, vector<128x128xf32>, vector<8x128xf32> -> vector<8x128xf32>
    %29 = arith.addf %27, %28 : vector<8x128xf32>
    %c0_18 = arith.constant 0 : index
    %c0_19 = arith.constant 0 : index
    %30 = vector.load %arg10[%c0_18, %c0_19] : memref<8x128xf32, #tpu.memory_space<vmem>>, vector<8x128xf32>
    tpu.vector_store %arg10[%c0_18, %c0_19], %29 {strides = array<i32>} : memref<8x128xf32, #tpu.memory_space<vmem>>, vector<8x128xf32>,
    return
  }
  func.func @transform_0(%arg0: i32, %arg1: i32) -> (i32, i32) {
    %c1_i32 = arith.constant 1 : i32
    %0 = arith.muli %arg0, %c1_i32 : i32
    %1 = arith.addi %0, %arg1 : i32
    %c0_i32 = arith.constant 0 : i32
    %c0_i32_0 = arith.constant 0 : i32
    return %1, %c0_i32 : i32, i32
  }
  func.func @transform_1(%arg0: i32, %arg1: i32) -> (i32, i32) {
    %c1_i32 = arith.constant 1 : i32
    %0 = arith.muli %arg0, %c1_i32 : i32
    %1 = arith.addi %0, %arg1 : i32
    %c0_i32 = arith.constant 0 : i32
    %c0_i32_0 = arith.constant 0 : i32
    return %1, %c0_i32 : i32, i32
  }
  func.func @transform_2(%arg0: i32, %arg1: i32) -> (i32, i32) {
    %c1_i32 = arith.constant 1 : i32
    %0 = arith.muli %arg0, %c1_i32 : i32
    %1 = arith.addi %0, %arg1 : i32
    %c0_i32 = arith.constant 0 : i32
    %c0_i32_0 = arith.constant 0 : i32
    return %1, %c0_i32 : i32, i32
  }
  func.func @transform_3(%arg0: i32, %arg1: i32) -> (i32, i32) {
    %c1_i32 = arith.constant 1 : i32
    %0 = arith.muli %arg0, %c1_i32 : i32
    %1 = arith.addi %0, %arg1 : i32
    %c0_i32 = arith.constant 0 : i32
    %c0_i32_0 = arith.constant 0 : i32
    return %1, %c0_i32 : i32, i32
  }
  func.func @transform_4(%arg0: i32, %arg1: i32) -> (i32, i32) {
    %c1_i32 = arith.constant 1 : i32
    %0 = arith.muli %arg0, %c1_i32 : i32
    %1 = arith.addi %0, %arg1 : i32
    %c0_i32 = arith.constant 0 : i32
    %c0_i32_0 = arith.constant 0 : i32
    return %1, %c0_i32 : i32, i32
  }
  func.func @transform_5(%arg0: i32, %arg1: i32) -> (i32, i32) {
    %c0_i32 = arith.constant 0 : i32
    %c0_i32_0 = arith.constant 0 : i32
    %c0_i32_1 = arith.constant 0 : i32
    return %c0_i32, %c0_i32_0 : i32, i32
  }
  func.func @transform_6(%arg0: i32, %arg1: i32) -> (i32, i32) {
    %c0_i32 = arith.constant 0 : i32
    %c0_i32_0 = arith.constant 0 : i32
    %c0_i32_1 = arith.constant 0 : i32
    return %c0_i32, %c0_i32_0 : i32, i32
  }
  func.func @transform_7(%arg0: i32, %arg1: i32) -> (i32, i32) {
    %c0_i32 = arith.constant 0 : i32
    %c0_i32_0 = arith.constant 0 : i32
    %c0_i32_1 = arith.constant 0 : i32
    return %c0_i32, %c0_i32_0 : i32, i32
  }
  func.func @transform_8(%arg0: i32, %arg1: i32) -> (i32, i32) {
    %c0_i32 = arith.constant 0 : i32
    %c0_i32_0 = arith.constant 0 : i32
    return %arg0, %c0_i32 : i32, i32
  }
}

</mosaic_0001>

<llo_original>
// kernel: _criterion_device.1
$region0: #{_criterion_device.1}
  #allocation0 [shape = 'u32[]', space=smem, size = 0x4, offset = 0x4, fixed_abs, tag = 'smem constant byte address 0x4 - core index']
  #allocation1 [shape = 'u32[144,128]{1,0:T(1,128)}', space=vmem, size = 0x12000, scoped, tag = 'internal scratch']
  %s0 = inlined_call_operand.vmem [shape: f32[128,128], index: 0, kind: input, shape index: {}]
  %s1 = inlined_call_operand.vmem [shape: f32[128,128], index: 1, kind: input, shape index: {}]
  %s2 = inlined_call_operand.vmem [shape: f32[128,128], index: 2, kind: input, shape index: {}]
  %s3 = inlined_call_operand.vmem [shape: f32[128,1], index: 3, kind: input, shape index: {}]
  %s4 = inlined_call_operand.vmem [shape: f32[128,128], index: 4, kind: input, shape index: {}]
  %s5 = inlined_call_operand.vmem [shape: f32[8,128], index: 5, kind: input, shape index: {}]
  %s6 = inlined_call_operand.vmem [shape: f32[8,128], index: 6, kind: input, shape index: {}]
  %s7 = inlined_call_operand.vmem [shape: f32[8,128], index: 7, kind: input, shape index: {}]
  %s8 = inlined_call_operand.vmem [shape: f32[8,128], index: 8, kind: output, shape index: {}]
  %s9 = sld [smem:[#allocation0]]
  $region50: #{_criterion_device.1} parent=0
    _
  %s11 = ssub.s32 1, %s9
  %s12 = scalar_select 0, %s11, %s9
  // Predicated region
  $region2: #{_criterion_device.1} parent=0 // pred_check
    _
  $region3: #{_criterion_device.1} parent=0 // pred_check_branch
    %14 = sbr.rel (0) target = $region5
  $region4: #{_criterion_device.1} parent=0 // pred_region
    %s15 = sadd.s32 0, 0
    %s16 = smul.u32 16, %s15
    %p17 = scmp.lt.s32.totalorder %s16, 15
    %s18 = scalar_select %p17, %s16, 15
    %s19 = smul.addr %s18, 8
    %s20 = scalar_lea.vmem %s0, %s19
    %s21 = sadd.s32 0, 0
    %s22 = smul.u32 16, %s21
  $region5: #{_criterion_device.1} parent=0 // pred_fallthru
    _
  // Predicated region
  $region6: #{_criterion_device.1} parent=0 // pred_check
    _
  $region7: #{_criterion_device.1} parent=0 // pred_check_branch
    %24 = sbr.rel (0) target = $region9
  $region8: #{_criterion_device.1} parent=0 // pred_region
    %s25 = sadd.s32 0, 0
    %s26 = smul.u32 16, %s25
    %p27 = scmp.lt.s32.totalorder %s26, 15
    %s28 = scalar_select %p27, %s26, 15
    %s29 = smul.addr %s28, 8
    %s30 = scalar_lea.vmem %s1, %s29
    %s31 = sadd.s32 0, 0
    %s32 = smul.u32 16, %s31
  $region9: #{_criterion_device.1} parent=0 // pred_fallthru
    _
  // Predicated region
  $region10: #{_criterion_device.1} parent=0 // pred_check
    _
  $region11: #{_criterion_device.1} parent=0 // pred_check_branch
    %34 = sbr.rel (0) target = $region13
  $region12: #{_criterion_device.1} parent=0 // pred_region
    %s35 = sadd.s32 0, 0
    %s36 = smul.u32 16, %s35
    %p37 = scmp.lt.s32.totalorder %s36, 15
    %s38 = scalar_select %p37, %s36, 15
    %s39 = smul.addr %s38, 8
    %s40 = scalar_lea.vmem %s2, %s39
    %s41 = sadd.s32 0, 0
    %s42 = smul.u32 16, %s41
  $region13: #{_criterion_device.1} parent=0 // pred_fallthru
    _
  // Predicated region
  $region14: #{_criterion_device.1} parent=0 // pred_check
    _
  $region15: #{_criterion_device.1} parent=0 // pred_check_branch
    %44 = sbr.rel (0) target = $region17
  $region16: #{_criterion_device.1} parent=0 // pred_region
    %s45 = sadd.s32 0, 0
    %s46 = smul.u32 16, %s45
    %p47 = scmp.lt.s32.totalorder %s46, 15
    %s48 = scalar_select %p47, %s46, 15
    %s49 = smul.addr %s48, 8
    %s50 = scalar_lea.vmem %s3, %s49
    %s51 = sadd.s32 0, 0
    %s52 = smul.u32 16, %s51
  $region17: #{_criterion_device.1} parent=0 // pred_fallthru
    _
  // Predicated region
  $region18: #{_criterion_device.1} parent=0 // pred_check
    _
  $region19: #{_criterion_device.1} parent=0 // pred_check_branch
    %54 = sbr.rel (0) target = $region21
  $region20: #{_criterion_device.1} parent=0 // pred_region
    %s55 = sadd.s32 0, 0
    %s56 = smul.u32 16, %s55
    %p57 = scmp.lt.s32.totalorder %s56, 15
    %s58 = scalar_select %p57, %s56, 15
    %s59 = smul.addr %s58, 8
    %s60 = scalar_lea.vmem %s4, %s59
    %s61 = sadd.s32 0, 0
    %s62 = smul.u32 16, %s61
  $region21: #{_criterion_device.1} parent=0 // pred_fallthru
    _
  // Predicated region
  $region22: #{_criterion_device.1} parent=0 // pred_check
    _
  $region23: #{_criterion_device.1} parent=0 // pred_check_branch
    %64 = sbr.rel (0) target = $region25
  $region24: #{_criterion_device.1} parent=0 // pred_region
    _
  $region25: #{_criterion_device.1} parent=0 // pred_fallthru
    _
  // Predicated region
  $region26: #{_criterion_device.1} parent=0 // pred_check
    _
  $region27: #{_criterion_device.1} parent=0 // pred_check_branch
    %66 = sbr.rel (0) target = $region29
  $region28: #{_criterion_device.1} parent=0 // pred_region
    _
  $region29: #{_criterion_device.1} parent=0 // pred_fallthru
    _
  // Predicated region
  $region30: #{_criterion_device.1} parent=0 // pred_check
    _
  $region31: #{_criterion_device.1} parent=0 // pred_check_branch
    %68 = sbr.rel (0) target = $region33
  $region32: #{_criterion_device.1} parent=0 // pred_region
    _
  $region33: #{_criterion_device.1} parent=0 // pred_fallthru
    _
  %s69 = sadd.s32 0, 0
  %s70 = smul.u32 16, %s69
  %p71 = scmp.lt.s32.totalorder %s70, 15
  %s72 = scalar_select %p71, %s70, 15
  %s73 = smul.addr %s72, 8
  %s74 = scalar_lea.vmem %s0, %s73
  %s75 = sadd.s32 0, 0
  %s76 = smul.u32 16, %s75
  %p77 = scmp.lt.s32.totalorder %s76, 15
  %s78 = scalar_select %p77, %s76, 15
  %s79 = smul.addr %s78, 8
  %s80 = scalar_lea.vmem %s1, %s79
  %s81 = sadd.s32 0, 0
  %s82 = smul.u32 16, %s81
  %p83 = scmp.lt.s32.totalorder %s82, 15
  %s84 = scalar_select %p83, %s82, 15
  %s85 = smul.addr %s84, 8
  %s86 = scalar_lea.vmem %s2, %s85
  %s87 = sadd.s32 0, 0
  %s88 = smul.u32 16, %s87
  %p89 = scmp.lt.s32.totalorder %s88, 15
  %s90 = scalar_select %p89, %s88, 15
  %s91 = smul.addr %s90, 8
  %s92 = scalar_lea.vmem %s3, %s91
  %s93 = sadd.s32 0, 0
  %s94 = smul.u32 16, %s93
  %p95 = scmp.lt.s32.totalorder %s94, 15
  %s96 = scalar_select %p95, %s94, 15
  %s97 = smul.addr %s96, 8
  %s98 = scalar_lea.vmem %s4, %s97
  %s99 = sadd.s32 0, 0
  %s100 = smul.u32 16, %s99
  %p101 = scmp.lt.s32.totalorder %s100, 15
  %s102 = scalar_select %p101, %s100, 15
  %s103 = smul.addr %s102, 8
  %s104 = scalar_lea.vmem %s0, %s103
  %s105 = sadd.s32 0, 0
  %s106 = smul.u32 16, %s105
  %s107 = sadd.s32 0, 0
  %s108 = smul.u32 16, %s107
  %p109 = scmp.lt.s32.totalorder %s108, 15
  %s110 = scalar_select %p109, %s108, 15
  %s111 = smul.addr %s110, 8
  %s112 = scalar_lea.vmem %s1, %s111
  %s113 = sadd.s32 0, 0
  %s114 = smul.u32 16, %s113
  %s115 = sadd.s32 0, 0
  %s116 = smul.u32 16, %s115
  %p117 = scmp.lt.s32.totalorder %s116, 15
  %s118 = scalar_select %p117, %s116, 15
  %s119 = smul.addr %s118, 8
  %s120 = scalar_lea.vmem %s2, %s119
  %s121 = sadd.s32 0, 0
  %s122 = smul.u32 16, %s121
  %s123 = sadd.s32 0, 0
  %s124 = smul.u32 16, %s123
  %p125 = scmp.lt.s32.totalorder %s124, 15
  %s126 = scalar_select %p125, %s124, 15
  %s127 = smul.addr %s126, 8
  %s128 = scalar_lea.vmem %s3, %s127
  %s129 = sadd.s32 0, 0
  %s130 = smul.u32 16, %s129
  %s131 = sadd.s32 0, 0
  %s132 = smul.u32 16, %s131
  %p133 = scmp.lt.s32.totalorder %s132, 15
  %s134 = scalar_select %p133, %s132, 15
  %s135 = smul.addr %s134, 8
  %s136 = scalar_lea.vmem %s4, %s135
  %s137 = sadd.s32 0, 0
  %s138 = smul.u32 16, %s137
  %p139 = scmp.eq.s32.totalorder 0, 0
  // Predicated region
  $region34: #{_criterion_device.1} parent=0 // pred_check
    %p140 = pneg %p139
  $region35: #{_criterion_device.1} parent=0 // pred_check_branch
    %142 = sbr.rel (%p140) target = $region37
  $region36: #{_criterion_device.1} parent=0 // pred_region
    %143 = vst [vmem:[%s8] sm:$0xff] 0.0
  $region37: #{_criterion_device.1} parent=0 // pred_fallthru
    _
  %p144 = scmp.eq.s32.totalorder 0, 0
  %p145 = pnand %p139, %p144
  %p146 = pneg %p145
  // Predicated region
  $region38: #{_criterion_device.1} parent=0 // pred_check
    _
  $region39: #{_criterion_device.1} parent=0 // pred_check_branch
    %148 = sbr.rel (%p145) target = $region41
  $region40: #{_criterion_device.1} parent=0 // pred_region
    %v149 = vld [vmem:[%s5] sm:$0xff]
    %v150 = vld [vmem:[%s6] sm:$0xff]
    %v151 = vld [vmem:[%s7] sm:$0xff]
    %vm152 = vcmp.gt.f32.partialorder %v151, 0.0
    %v153 = vsub.f32 %v149, %v150
    %v154 = vsub.f32 %v150, %v149
    %v155 = vsel %vm152, %v153, %v154
    %v156 = vand.u32 2147483647, %v151
    %v157 = vmax.f32 %v155, 0.0
    %v158 = vand.u32 2147483647, %v155
    %v159 = vsub.f32 0.0, %v158
    %v160 = vmul.f32 %v159, 1.442695
    %v161 = vpow.pop %v160
    %v162 = vadd.f32 %v161, 1.0
    %v163 = vlog2.pop %v162
    %v164 = vmul.f32 %v163, 0.6931472
    %v165 = vadd.f32 %v157, %v164
    %v166 = vmul.f32 %v156, %v165
    %167 = vadd.xlane.f32.xlu0 %v166
    %v168 = vpop.xlane.xlu0 %167
    %v169 = vrot.slane %v168, 4
    %v170 = vadd.f32 %v168, %v169
    %v171 = vrot.slane %v170, 2
    %v172 = vadd.f32 %v170, %v171
    %v173 = vrot.slane %v172, 1
    %v174 = vadd.f32 %v172, %v173
    %s175 = vtos %v174
    %s176 = smul.f32 %s175, 0.015625
    %v177 = vlaneseq
    %v178 = vand.u32 %v177, 127
    %v179 = vld [vmem:[%s8] sm:$0xff]
    %vm180 = vcmp.eq.s32.totalorder %v178, 9
    %v181 = vstv %s176
    %v182 = vsel %vm180, %v181, 0.0
    %v183 = vadd.f32 %v179, %v182
    %184 = vst [vmem:[%s8] sm:$0xff] %v183
  $region41: #{_criterion_device.1} parent=0 // pred_fallthru
    _
  %v185 = vld [vmem:[%s104] sm:$0xff]
  %v186 = vld [vmem:[%s104 + $0x8] sm:$0xff]
  %v187 = vld [vmem:[%s104 + $0x10] sm:$0xff]
  %v188 = vld [vmem:[%s104 + $0x18] sm:$0xff]
  %v189 = vld [vmem:[%s104 + $0x20] sm:$0xff]
  %v190 = vld [vmem:[%s104 + $0x28] sm:$0xff]
  %v191 = vld [vmem:[%s104 + $0x30] sm:$0xff]
  %v192 = vld [vmem:[%s104 + $0x38] sm:$0xff]
  %v193 = vld [vmem:[%s104 + $0x40] sm:$0xff]
  %v194 = vld [vmem:[%s104 + $0x48] sm:$0xff]
  %v195 = vld [vmem:[%s104 + $0x50] sm:$0xff]
  %v196 = vld [vmem:[%s104 + $0x58] sm:$0xff]
  %v197 = vld [vmem:[%s104 + $0x60] sm:$0xff]
  %v198 = vld [vmem:[%s104 + $0x68] sm:$0xff]
  %v199 = vld [vmem:[%s104 + $0x70] sm:$0xff]
  %v200 = vld [vmem:[%s104 + $0x78] sm:$0xff]
  %v201 = vld [vmem:[%s112] sm:$0xff]
  %v202 = vld [vmem:[%s112 + $0x8] sm:$0xff]
  %v203 = vld [vmem:[%s112 + $0x10] sm:$0xff]
  %v204 = vld [vmem:[%s112 + $0x18] sm:$0xff]
  %v205 = vld [vmem:[%s112 + $0x20] sm:$0xff]
  %v206 = vld [vmem:[%s112 + $0x28] sm:$0xff]
  %v207 = vld [vmem:[%s112 + $0x30] sm:$0xff]
  %v208 = vld [vmem:[%s112 + $0x38] sm:$0xff]
  %v209 = vld [vmem:[%s112 + $0x40] sm:$0xff]
  %v210 = vld [vmem:[%s112 + $0x48] sm:$0xff]
  %v211 = vld [vmem:[%s112 + $0x50] sm:$0xff]
  %v212 = vld [vmem:[%s112 + $0x58] sm:$0xff]
  %v213 = vld [vmem:[%s112 + $0x60] sm:$0xff]
  %v214 = vld [vmem:[%s112 + $0x68] sm:$0xff]
  %v215 = vld [vmem:[%s112 + $0x70] sm:$0xff]
  %v216 = vld [vmem:[%s112 + $0x78] sm:$0xff]
  %v217 = vld [vmem:[%s120] sm:$0xff]
  %v218 = vld [vmem:[%s120 + $0x8] sm:$0xff]
  %v219 = vld [vmem:[%s120 + $0x10] sm:$0xff]
  %v220 = vld [vmem:[%s120 + $0x18] sm:$0xff]
  %v221 = vld [vmem:[%s120 + $0x20] sm:$0xff]
  %v222 = vld [vmem:[%s120 + $0x28] sm:$0xff]
  %v223 = vld [vmem:[%s120 + $0x30] sm:$0xff]
  %v224 = vld [vmem:[%s120 + $0x38] sm:$0xff]
  %v225 = vld [vmem:[%s120 + $0x40] sm:$0xff]
  %v226 = vld [vmem:[%s120 + $0x48] sm:$0xff]
  %v227 = vld [vmem:[%s120 + $0x50] sm:$0xff]
  %v228 = vld [vmem:[%s120 + $0x58] sm:$0xff]
  %v229 = vld [vmem:[%s120 + $0x60] sm:$0xff]
  %v230 = vld [vmem:[%s120 + $0x68] sm:$0xff]
  %v231 = vld [vmem:[%s120 + $0x70] sm:$0xff]
  %v232 = vld [vmem:[%s120 + $0x78] sm:$0xff]
  %v233 = vsub.f32 %v185, %v201
  %v234 = vsub.f32 %v186, %v202
  %v235 = vsub.f32 %v187, %v203
  %v236 = vsub.f32 %v188, %v204
  %v237 = vsub.f32 %v189, %v205
  %v238 = vsub.f32 %v190, %v206
  %v239 = vsub.f32 %v191, %v207
  %v240 = vsub.f32 %v192, %v208
  %v241 = vsub.f32 %v193, %v209
  %v242 = vsub.f32 %v194, %v210
  %v243 = vsub.f32 %v195, %v211
  %v244 = vsub.f32 %v196, %v212
  %v245 = vsub.f32 %v197, %v213
  %v246 = vsub.f32 %v198, %v214
  %v247 = vsub.f32 %v199, %v215
  %v248 = vsub.f32 %v200, %v216
  %v249 = vld [vmem:[%s128] sm:$0xff]
  %v250 = vld [vmem:[%s128 + $0x8] sm:$0xff]
  %v251 = vld [vmem:[%s128 + $0x10] sm:$0xff]
  %v252 = vld [vmem:[%s128 + $0x18] sm:$0xff]
  %v253 = vld [vmem:[%s128 + $0x20] sm:$0xff]
  %v254 = vld [vmem:[%s128 + $0x28] sm:$0xff]
  %v255 = vld [vmem:[%s128 + $0x30] sm:$0xff]
  %v256 = vld [vmem:[%s128 + $0x38] sm:$0xff]
  %v257 = vld [vmem:[%s128 + $0x40] sm:$0xff]
  %v258 = vld [vmem:[%s128 + $0x48] sm:$0xff]
  %v259 = vld [vmem:[%s128 + $0x50] sm:$0xff]
  %v260 = vld [vmem:[%s128 + $0x58] sm:$0xff]
  %v261 = vld [vmem:[%s128 + $0x60] sm:$0xff]
  %v262 = vld [vmem:[%s128 + $0x68] sm:$0xff]
  %v263 = vld [vmem:[%s128 + $0x70] sm:$0xff]
  %v264 = vld [vmem:[%s128 + $0x78] sm:$0xff]
  %vm265 = vcmp.gt.f32.partialorder %v249, 0.5
  %vm266 = vcmp.gt.f32.partialorder %v250, 0.5
  %vm267 = vcmp.gt.f32.partialorder %v251, 0.5
  %vm268 = vcmp.gt.f32.partialorder %v252, 0.5
  %vm269 = vcmp.gt.f32.partialorder %v253, 0.5
  %vm270 = vcmp.gt.f32.partialorder %v254, 0.5
  %vm271 = vcmp.gt.f32.partialorder %v255, 0.5
  %vm272 = vcmp.gt.f32.partialorder %v256, 0.5
  %vm273 = vcmp.gt.f32.partialorder %v257, 0.5
  %vm274 = vcmp.gt.f32.partialorder %v258, 0.5
  %vm275 = vcmp.gt.f32.partialorder %v259, 0.5
  %vm276 = vcmp.gt.f32.partialorder %v260, 0.5
  %vm277 = vcmp.gt.f32.partialorder %v261, 0.5
  %vm278 = vcmp.gt.f32.partialorder %v262, 0.5
  %vm279 = vcmp.gt.f32.partialorder %v263, 0.5
  %vm280 = vcmp.gt.f32.partialorder %v264, 0.5
  %v281 = vmul.f32 %v233, %v233
  %v282 = vmul.f32 %v234, %v234
  %v283 = vmul.f32 %v235, %v235
  %v284 = vmul.f32 %v236, %v236
  %v285 = vmul.f32 %v237, %v237
  %v286 = vmul.f32 %v238, %v238
  %v287 = vmul.f32 %v239, %v239
  %v288 = vmul.f32 %v240, %v240
  %v289 = vmul.f32 %v241, %v241
  %v290 = vmul.f32 %v242, %v242
  %v291 = vmul.f32 %v243, %v243
  %v292 = vmul.f32 %v244, %v244
  %v293 = vmul.f32 %v245, %v245
  %v294 = vmul.f32 %v246, %v246
  %v295 = vmul.f32 %v247, %v247
  %v296 = vmul.f32 %v248, %v248
  %v297 = vand.u32 2147483647, %v233
  %v298 = vand.u32 2147483647, %v234
  %v299 = vand.u32 2147483647, %v235
  %v300 = vand.u32 2147483647, %v236
  %v301 = vand.u32 2147483647, %v237
  %v302 = vand.u32 2147483647, %v238
  %v303 = vand.u32 2147483647, %v239
  %v304 = vand.u32 2147483647, %v240
  %v305 = vand.u32 2147483647, %v241
  %v306 = vand.u32 2147483647, %v242
  %v307 = vand.u32 2147483647, %v243
  %v308 = vand.u32 2147483647, %v244
  %v309 = vand.u32 2147483647, %v245
  %v310 = vand.u32 2147483647, %v246
  %v311 = vand.u32 2147483647, %v247
  %v312 = vand.u32 2147483647, %v248
  %v313 = vsel %vm265, 1, 0
  %v314 = vsel %vm266, 1, 0
  %v315 = vsel %vm267, 1, 0
  %v316 = vsel %vm268, 1, 0
  %v317 = vsel %vm269, 1, 0
  %v318 = vsel %vm270, 1, 0
  %v319 = vsel %vm271, 1, 0
  %v320 = vsel %vm272, 1, 0
  %v321 = vsel %vm273, 1, 0
  %v322 = vsel %vm274, 1, 0
  %v323 = vsel %vm275, 1, 0
  %v324 = vsel %vm276, 1, 0
  %v325 = vsel %vm277, 1, 0
  %v326 = vsel %vm278, 1, 0
  %v327 = vsel %vm279, 1, 0
  %v328 = vsel %vm280, 1, 0
  %329 = vset.pattern.permute.xlu0 0
  %330 = vperm.xlu0 %329, %v313
  %v331 = vpop.permute.xlu0 %330
  %332 = vset.pattern.permute.xlu0 0
  %333 = vperm.xlu0 %332, %v314
  %v334 = vpop.permute.xlu0 %333
  %335 = vset.pattern.permute.xlu0 0
  %336 = vperm.xlu0 %335, %v315
  %v337 = vpop.permute.xlu0 %336
  %338 = vset.pattern.permute.xlu0 0
  %339 = vperm.xlu0 %338, %v316
  %v340 = vpop.permute.xlu0 %339
  %341 = vset.pattern.permute.xlu0 0
  %342 = vperm.xlu0 %341, %v317
  %v343 = vpop.permute.xlu0 %342
  %344 = vset.pattern.permute.xlu0 0
  %345 = vperm.xlu0 %344, %v318
  %v346 = vpop.permute.xlu0 %345
  %347 = vset.pattern.permute.xlu0 0
  %348 = vperm.xlu0 %347, %v319
  %v349 = vpop.permute.xlu0 %348
  %350 = vset.pattern.permute.xlu0 0
  %351 = vperm.xlu0 %350, %v320
  %v352 = vpop.permute.xlu0 %351
  %353 = vset.pattern.permute.xlu0 0
  %354 = vperm.xlu0 %353, %v321
  %v355 = vpop.permute.xlu0 %354
  %356 = vset.pattern.permute.xlu0 0
  %357 = vperm.xlu0 %356, %v322
  %v358 = vpop.permute.xlu0 %357
  %359 = vset.pattern.permute.xlu0 0
  %360 = vperm.xlu0 %359, %v323
  %v361 = vpop.permute.xlu0 %360
  %362 = vset.pattern.permute.xlu0 0
  %363 = vperm.xlu0 %362, %v324
  %v364 = vpop.permute.xlu0 %363
  %365 = vset.pattern.permute.xlu0 0
  %366 = vperm.xlu0 %365, %v325
  %v367 = vpop.permute.xlu0 %366
  %368 = vset.pattern.permute.xlu0 0
  %369 = vperm.xlu0 %368, %v326
  %v370 = vpop.permute.xlu0 %369
  %371 = vset.pattern.permute.xlu0 0
  %372 = vperm.xlu0 %371, %v327
  %v373 = vpop.permute.xlu0 %372
  %374 = vset.pattern.permute.xlu0 0
  %375 = vperm.xlu0 %374, %v328
  %v376 = vpop.permute.xlu0 %375
  %vm377 = vcmp.eq.s32.totalorder %v331, 1
  %vm378 = vcmp.eq.s32.totalorder %v334, 1
  %vm379 = vcmp.eq.s32.totalorder %v337, 1
  %vm380 = vcmp.eq.s32.totalorder %v340, 1
  %vm381 = vcmp.eq.s32.totalorder %v343, 1
  %vm382 = vcmp.eq.s32.totalorder %v346, 1
  %vm383 = vcmp.eq.s32.totalorder %v349, 1
  %vm384 = vcmp.eq.s32.totalorder %v352, 1
  %vm385 = vcmp.eq.s32.totalorder %v355, 1
  %vm386 = vcmp.eq.s32.totalorder %v358, 1
  %vm387 = vcmp.eq.s32.totalorder %v361, 1
  %vm388 = vcmp.eq.s32.totalorder %v364, 1
  %vm389 = vcmp.eq.s32.totalorder %v367, 1
  %vm390 = vcmp.eq.s32.totalorder %v370, 1
  %vm391 = vcmp.eq.s32.totalorder %v373, 1
  %vm392 = vcmp.eq.s32.totalorder %v376, 1
  %v393 = vsel %vm377, %v281, %v297
  %v394 = vsel %vm378, %v282, %v298
  %v395 = vsel %vm379, %v283, %v299
  %v396 = vsel %vm380, %v284, %v300
  %v397 = vsel %vm381, %v285, %v301
  %v398 = vsel %vm382, %v286, %v302
  %v399 = vsel %vm383, %v287, %v303
  %v400 = vsel %vm384, %v288, %v304
  %v401 = vsel %vm385, %v289, %v305
  %v402 = vsel %vm386, %v290, %v306
  %v403 = vsel %vm387, %v291, %v307
  %v404 = vsel %vm388, %v292, %v308
  %v405 = vsel %vm389, %v293, %v309
  %v406 = vsel %vm390, %v294, %v310
  %v407 = vsel %vm391, %v295, %v311
  %v408 = vsel %vm392, %v296, %v312
  %v409 = vmul.f32 %v217, %v393
  %v410 = vmul.f32 %v218, %v394
  %v411 = vmul.f32 %v219, %v395
  %v412 = vmul.f32 %v220, %v396
  %v413 = vmul.f32 %v221, %v397
  %v414 = vmul.f32 %v222, %v398
  %v415 = vmul.f32 %v223, %v399
  %v416 = vmul.f32 %v224, %v400
  %v417 = vmul.f32 %v225, %v401
  %v418 = vmul.f32 %v226, %v402
  %v419 = vmul.f32 %v227, %v403
  %v420 = vmul.f32 %v228, %v404
  %v421 = vmul.f32 %v229, %v405
  %v422 = vmul.f32 %v230, %v406
  %v423 = vmul.f32 %v231, %v407
  %v424 = vmul.f32 %v232, %v408
  %425 = vadd.xlane.f32.xlu0 %v409
  %v426 = vpop.xlane.xlu0 %425
  %427 = vadd.xlane.f32.xlu0 %v410
  %v428 = vpop.xlane.xlu0 %427
  %429 = vadd.xlane.f32.xlu0 %v411
  %v430 = vpop.xlane.xlu0 %429
  %431 = vadd.xlane.f32.xlu0 %v412
  %v432 = vpop.xlane.xlu0 %431
  %433 = vadd.xlane.f32.xlu0 %v413
  %v434 = vpop.xlane.xlu0 %433
  %435 = vadd.xlane.f32.xlu0 %v414
  %v436 = vpop.xlane.xlu0 %435
  %437 = vadd.xlane.f32.xlu0 %v415
  %v438 = vpop.xlane.xlu0 %437
  %439 = vadd.xlane.f32.xlu0 %v416
  %v440 = vpop.xlane.xlu0 %439
  %441 = vadd.xlane.f32.xlu0 %v417
  %v442 = vpop.xlane.xlu0 %441
  %443 = vadd.xlane.f32.xlu0 %v418
  %v444 = vpop.xlane.xlu0 %443
  %445 = vadd.xlane.f32.xlu0 %v419
  %v446 = vpop.xlane.xlu0 %445
  %447 = vadd.xlane.f32.xlu0 %v420
  %v448 = vpop.xlane.xlu0 %447
  %449 = vadd.xlane.f32.xlu0 %v421
  %v450 = vpop.xlane.xlu0 %449
  %451 = vadd.xlane.f32.xlu0 %v422
  %v452 = vpop.xlane.xlu0 %451
  %453 = vadd.xlane.f32.xlu0 %v423
  %v454 = vpop.xlane.xlu0 %453
  %455 = vadd.xlane.f32.xlu0 %v424
  %v456 = vpop.xlane.xlu0 %455
  %v457 = vld [vmem:[%s136] sm:$0xff]
  %v458 = vld [vmem:[%s136 + $0x8] sm:$0xff]
  %v459 = vld [vmem:[%s136 + $0x10] sm:$0xff]
  %v460 = vld [vmem:[%s136 + $0x18] sm:$0xff]
  %v461 = vld [vmem:[%s136 + $0x20] sm:$0xff]
  %v462 = vld [vmem:[%s136 + $0x28] sm:$0xff]
  %v463 = vld [vmem:[%s136 + $0x30] sm:$0xff]
  %v464 = vld [vmem:[%s136 + $0x38] sm:$0xff]
  %v465 = vld [vmem:[%s136 + $0x40] sm:$0xff]
  %v466 = vld [vmem:[%s136 + $0x48] sm:$0xff]
  %v467 = vld [vmem:[%s136 + $0x50] sm:$0xff]
  %v468 = vld [vmem:[%s136 + $0x58] sm:$0xff]
  %v469 = vld [vmem:[%s136 + $0x60] sm:$0xff]
  %v470 = vld [vmem:[%s136 + $0x68] sm:$0xff]
  %v471 = vld [vmem:[%s136 + $0x70] sm:$0xff]
  %v472 = vld [vmem:[%s136 + $0x78] sm:$0xff]
  %v473 = vmul.f32 %v457, %v426
  %v474 = vmul.f32 %v458, %v428
  %v475 = vmul.f32 %v459, %v430
  %v476 = vmul.f32 %v460, %v432
  %v477 = vmul.f32 %v461, %v434
  %v478 = vmul.f32 %v462, %v436
  %v479 = vmul.f32 %v463, %v438
  %v480 = vmul.f32 %v464, %v440
  %v481 = vmul.f32 %v465, %v442
  %v482 = vmul.f32 %v466, %v444
  %v483 = vmul.f32 %v467, %v446
  %v484 = vmul.f32 %v468, %v448
  %v485 = vmul.f32 %v469, %v450
  %v486 = vmul.f32 %v470, %v452
  %v487 = vmul.f32 %v471, %v454
  %v488 = vmul.f32 %v472, %v456
  %v489 = vld [vmem:[%s8] sm:$0xff]
  %490 = vmatprep.subr.mxu0 0.0
  %491 = vmatpush1.msra.mxu0 %v473
  %492 = vmatprep.subr.mxu0 0.0
  %493 = vmatpush1.msra.mxu0 %v474
  %494 = vmatprep.subr.mxu0 0.0
  %495 = vmatpush1.msra.mxu0 %v475
  %496 = vmatprep.subr.mxu0 0.0
  %497 = vmatpush1.msra.mxu0 %v476
  %498 = vmatprep.subr.mxu0 0.0
  %499 = vmatpush1.msra.mxu0 %v477
  %500 = vmatprep.subr.mxu0 0.0
  %501 = vmatpush1.msra.mxu0 %v478
  %502 = vmatprep.subr.mxu0 0.0
  %503 = vmatpush1.msra.mxu0 %v479
  %504 = vmatprep.subr.mxu0 0.0
  %505 = vmatpush1.msra.mxu0 %v480
  %506 = vmatprep.subr.mxu0 0.0
  %507 = vmatpush1.msra.mxu0 %v481
  %508 = vmatprep.subr.mxu0 0.0
  %509 = vmatpush1.msra.mxu0 %v482
  %510 = vmatprep.subr.mxu0 0.0
  %511 = vmatpush1.msra.mxu0 %v483
  %512 = vmatprep.subr.mxu0 0.0
  %513 = vmatpush1.msra.mxu0 %v484
  %514 = vmatprep.subr.mxu0 0.0
  %515 = vmatpush1.msra.mxu0 %v485
  %516 = vmatprep.subr.mxu0 0.0
  %517 = vmatpush1.msra.mxu0 %v486
  %518 = vmatprep.subr.mxu0 0.0
  %519 = vmatpush1.msra.mxu0 %v487
  %520 = vmatprep.subr.mxu0 0.0
  %521 = vmatpush1.msra.mxu0 %v488
  %522 = vmatprep.subr.mxu0 0.0
  %523 = vmatpush1.msra.mxu0 0.0
  %524 = vmatprep.subr.mxu0 0.0
  %525 = vmatpush1.msra.mxu0 0.0
  %526 = vmatprep.subr.mxu0 0.0
  %527 = vmatpush1.msra.mxu0 0.0
  %528 = vmatprep.subr.mxu0 0.0
  %529 = vmatpush1.msra.mxu0 0.0
  %530 = vmatprep.subr.mxu0 0.0
  %531 = vmatpush1.msra.mxu0 0.0
  %532 = vmatprep.subr.mxu0 0.0
  %533 = vmatpush1.msra.mxu0 0.0
  %534 = vmatprep.subr.mxu0 0.0
  %535 = vmatpush1.msra.mxu0 0.0
  %536 = vmatprep.subr.mxu0 0.0
  %537 = vmatpush1.msra.mxu0 0.0
  %538 = vmatprep.subr.mxu0 0.0
  %539 = vmatpush1.msra.mxu0 0.0
  %540 = vmatprep.subr.mxu0 0.0
  %541 = vmatpush1.msra.mxu0 0.0
  %542 = vmatprep.subr.mxu0 0.0
  %543 = vmatpush1.msra.mxu0 0.0
  %544 = vmatprep.subr.mxu0 0.0
  %545 = vmatpush1.msra.mxu0 0.0
  %546 = vmatprep.subr.mxu0 0.0
  %547 = vmatpush1.msra.mxu0 0.0
  %548 = vmatprep.subr.mxu0 0.0
  %549 = vmatpush1.msra.mxu0 0.0
  %550 = vmatprep.subr.mxu0 0.0
  %551 = vmatpush1.msra.mxu0 0.0
  %552 = vmatprep.subr.mxu0 0.0
  %553 = vmatpush1.msra.mxu0 0.0
  %554 = vmatprep.mubr.f32.mxu0 0.0
  %555 = vmatmul.mubr.f32.gmra.mrb[0].mxu0 1.0
  %v556 = vpop.f32.mrb[0].mxu0
  %v557 = vadd.f32 0.0, %v556
  %v558 = vpop.f32.mrb[0].mxu0
  %559 = vdwg.mxu0
  %v560 = vadd.f32 %v489, %v557
  %561 = vst [vmem:[%s8] sm:$0xff] %v560
  // Predicated region
  $region42: #{_criterion_device.1} parent=0 // pred_check
    _
  $region43: #{_criterion_device.1} parent=0 // pred_check_branch
    %563 = sbr.rel (0) target = $region45
  $region44: #{_criterion_device.1} parent=0 // pred_region
    _
  $region45: #{_criterion_device.1} parent=0 // pred_fallthru
    _
  // Predicated region
  $region46: #{_criterion_device.1} parent=0 // pred_check
    _
  $region47: #{_criterion_device.1} parent=0 // pred_check_branch
    %565 = sbr.rel (0) target = $region49
  $region48: #{_criterion_device.1} parent=0 // pred_region
    _
  $region49: #{_criterion_device.1} parent=0 // pred_fallthru
    _

</llo_original>
